<compile_context>
chip_gen: v5e
topology: v5e:2x2
jax: 0.10.0
libtpu: 0.0.40
codegen_flags: <defaults>
</compile_context>

<pallas_src>
import jax
import jax.numpy as jnp
from jax.experimental import pallas as pl
from jax.experimental.pallas import tpu as pltpu


# ----------------------------------------------------------------------------
# Parameter construction (plain-JAX glue, mirrors BN_decompose.__init__)
# ----------------------------------------------------------------------------
def _fake_quant_255(v):
    """scale=(max-min)/255; zp=round(min/scale); zp=min(zp,0);
    v = clamp(round(v/scale) - zp, 0, 255) + zp; v *= scale.
    Kept identical to the PyTorch module (degenerate max==min left unguarded
    to preserve semantics)."""
    scale = (jnp.max(v) - jnp.min(v)) / 255.0
    zp = jnp.round(jnp.min(v) / scale)
    zp = jnp.where(zp > 0, 0.0, zp)
    v_q = jnp.clip(jnp.round(v / scale) - zp, 0.0, 255.0) + zp
    return v_q * scale


def make_bn_decompose_params(bn_weight, bn_bias, running_mean, running_var, eps=1e-5):
    var_sqrt = jnp.sqrt(running_var + eps)
    scalar = _fake_quant_255(bn_weight / var_sqrt)
    shift = _fake_quant_255(bn_bias - running_mean / var_sqrt * bn_weight)
    return scalar.astype(jnp.float32), shift.astype(jnp.float32)


# ----------------------------------------------------------------------------
# Pallas kernel:  y = x * scale + shift   (scale/shift per row, lane-broadcast)
# ----------------------------------------------------------------------------
def _bn_decompose_kernel(scale_ref, shift_ref, x_ref, o_ref):
    # x_ref: (tile_r, tile_s);  scale_ref / shift_ref: (tile_r, 1)
    o_ref[...] = x_ref[...] * scale_ref[...] + shift_ref[...]


def _pick_tiles(R, S, elem_bytes, target_block_bytes):
    # Lane (last) dim: multiple of 128, or the full extent.
    if S % 128 == 0:
        tile_s = min(S, 4096)
    else:
        tile_s = S
    # Sublane (second-to-last) dim: multiple of 8, or the full extent.
    want_r = max(1, target_block_bytes // (tile_s * elem_bytes))
    if want_r >= R or R <= 8:
        tile_r = R
    else:
        tile_r = max(8, (want_r // 8) * 8)
    return tile_r, tile_s


def bn_decompose_apply(x_nchw, scalar, shift, *, target_block_bytes=1 << 20):
    """y[n,c,h,w] = x[n,c,h,w] * scalar[c] + shift[c]  (per-channel affine)."""
    N, C, H, W = x_nchw.shape
    R, S = N * C, H * W
    dtype = x_nchw.dtype
    elem = jnp.dtype(dtype).itemsize

    # Free metadata reshape: row r = n*C + c  ->  channel c = r % C.
    x2d = x_nchw.reshape(R, S)

    # Tiny per-row parameter columns (N*C elements each).
    scale_col = jnp.tile(scalar.astype(dtype), N).reshape(R, 1)
    shift_col = jnp.tile(shift.astype(dtype), N).reshape(R, 1)

    tile_r, tile_s = _pick_tiles(R, S, elem, target_block_bytes)
    grid = (pl.cdiv(R, tile_r), pl.cdiv(S, tile_s))

    out2d = pl.pallas_call(
        _bn_decompose_kernel,
        out_shape=jax.ShapeDtypeStruct((R, S), dtype),
        grid_spec=pltpu.PrefetchScalarGridSpec(
            num_scalar_prefetch=0,
            grid=grid,
            in_specs=[
                pl.BlockSpec((tile_r, 1), lambda i, j: (i, 0)),       # scale col
                pl.BlockSpec((tile_r, 1), lambda i, j: (i, 0)),       # shift col
                pl.BlockSpec((tile_r, tile_s), lambda i, j: (i, j)),  # x tile
            ],
            out_specs=pl.BlockSpec((tile_r, tile_s), lambda i, j: (i, j)),
        ),
        compiler_params=pltpu.CompilerParams(
            dimension_semantics=("parallel", "parallel"),
        ),
    )(scale_col, shift_col, x2d)

    return out2d.reshape(N, C, H, W)


# ----------------------------------------------------------------------------
# Reference (pure JAX) for correctness check
# ----------------------------------------------------------------------------
def bn_decompose_ref(x_nchw, scalar, shift):
    s = scalar.reshape(1, -1, 1, 1)
    b = shift.reshape(1, -1, 1, 1)
    return x_nchw * s + b


if __name__ == "__main__":
    key = jax.random.PRNGKey(0)
    kx, kw, kb, km, kv = jax.random.split(key, 5)

    N, C, H, W = 2, 4, 16, 16

    # Deterministic synthetic BatchNorm2d(C) parameters / running stats.
    bn_weight = jax.random.uniform(kw, (C,), jnp.float32, 0.5, 1.5)
    bn_bias = jax.random.normal(kb, (C,), jnp.float32) * 0.1
    running_mean = jax.random.normal(km, (C,), jnp.float32) * 0.2
    running_var = jax.random.uniform(kv, (C,), jnp.float32, 0.5, 2.0)
    eps = 1e-5

    scalar, shift = make_bn_decompose_params(
        bn_weight, bn_bias, running_mean, running_var, eps
    )

    x = jax.random.normal(kx, (N, C, H, W), jnp.float32)

    y = bn_decompose_apply(x, scalar, shift)
    y = jax.block_until_ready(y)

    y_ref = bn_decompose_ref(x, scalar, shift)
    assert y.shape == (N, C, H, W)
    assert jnp.allclose(y, y_ref, atol=1e-6, rtol=1e-6)

    print("KERNEL_OK")
</pallas_src>

<mosaic_0001>
module attributes {stable_mosaic.version = 11 : i64} {
  func.func @_bn_decompose_kernel(%arg0: i32, %arg1: i32, %arg2: memref<8x1xf32, #tpu.memory_space<vmem>>, %arg3: memref<8x1xf32, #tpu.memory_space<vmem>>, %arg4: memref<8x256xf32, #tpu.memory_space<vmem>>, %arg5: memref<8x256xf32, #tpu.memory_space<vmem>>) attributes {dimension_semantics = [#tpu.dimension_semantics<parallel>, #tpu.dimension_semantics<parallel>], iteration_bounds = array<i64: 1, 1>, scalar_prefetch = 0 : i64, scratch_operands = 0 : i64, tpu.core_type = #tpu.core_type<tc>, window_params = [{transform_indices = @transform_0, window_bounds = array<i64: 8, 1>}, {transform_indices = @transform_1, window_bounds = array<i64: 8, 1>}, {transform_indices = @transform_2, window_bounds = array<i64: 8, 256>}, {transform_indices = @transform_3, window_bounds = array<i64: 8, 256>}]} {
    %c0 = arith.constant 0 : index
    %c0_0 = arith.constant 0 : index
    %0 = vector.load %arg4[%c0, %c0_0] : memref<8x256xf32, #tpu.memory_space<vmem>>, vector<8x256xf32>
    %c0_1 = arith.constant 0 : index
    %c0_2 = arith.constant 0 : index
    %1 = vector.load %arg2[%c0_1, %c0_2] : memref<8x1xf32, #tpu.memory_space<vmem>>, vector<8x1xf32>
    %2 = vector.broadcast %1 : vector<8x1xf32> to vector<8x256xf32>
    %3 = arith.mulf %0, %2 : vector<8x256xf32>
    %c0_3 = arith.constant 0 : index
    %c0_4 = arith.constant 0 : index
    %4 = vector.load %arg3[%c0_3, %c0_4] : memref<8x1xf32, #tpu.memory_space<vmem>>, vector<8x1xf32>
    %5 = vector.broadcast %4 : vector<8x1xf32> to vector<8x256xf32>
    %6 = arith.addf %3, %5 : vector<8x256xf32>
    %c0_5 = arith.constant 0 : index
    %c0_6 = arith.constant 0 : index
    %7 = vector.load %arg5[%c0_5, %c0_6] : memref<8x256xf32, #tpu.memory_space<vmem>>, vector<8x256xf32>
    tpu.vector_store %arg5[%c0_5, %c0_6], %6 {strides = array<i32>} : memref<8x256xf32, #tpu.memory_space<vmem>>, vector<8x256xf32>,
    return
  }
  func.func @transform_0(%arg0: i32, %arg1: i32) -> (i32, i32) {
    %c0_i32 = arith.constant 0 : i32
    %c0_i32_0 = arith.constant 0 : i32
    return %arg0, %c0_i32 : i32, i32
  }
  func.func @transform_1(%arg0: i32, %arg1: i32) -> (i32, i32) {
    %c0_i32 = arith.constant 0 : i32
    %c0_i32_0 = arith.constant 0 : i32
    return %arg0, %c0_i32 : i32, i32
  }
  func.func @transform_2(%arg0: i32, %arg1: i32) -> (i32, i32) {
    %c0_i32 = arith.constant 0 : i32
    return %arg0, %arg1 : i32, i32
  }
  func.func @transform_3(%arg0: i32, %arg1: i32) -> (i32, i32) {
    %c0_i32 = arith.constant 0 : i32
    return %arg0, %arg1 : i32, i32
  }
}

</mosaic_0001>

<llo_original>
// kernel: tpu_custom_call.1
$region0: #{tpu_custom_call.1}
  #allocation0 [shape = 'u32[]', space=smem, size = 0x4, offset = 0x4, fixed_abs, tag = 'smem constant byte address 0x4 - core index']
  #allocation1 [shape = 'u32[72,128]{1,0:T(1,128)}', space=vmem, size = 0x9000, scoped, tag = 'internal scratch']
  %s0 = inlined_call_operand.vmem [shape: f32[8,1], index: 0, kind: input, shape index: {}]
  %s1 = inlined_call_operand.vmem [shape: f32[8,1], index: 1, kind: input, shape index: {}]
  %s2 = inlined_call_operand.vmem [shape: f32[8,256], index: 2, kind: input, shape index: {}]
  %s3 = inlined_call_operand.hbm [shape: f32[8,256], index: 3, kind: output, shape index: {}]
  %s4 = sld [smem:[#allocation0]]
  $region22: #{tpu_custom_call.1} parent=0
    _
  %s6 = ssub.s32 1, %s4
  %s7 = scalar_select 0, %s6, %s4
  $region1: #{tpu_custom_call.1} parent=0
    #allocation2 [shape = 'u8[8192]{0}', space=vmem, size = 0x2000, scoped, tag = 'output window, operand 0, single buffered']
    #allocation3 [shape = 's32[1]{0}', space=sflag, size = 0x4, scoped, tag = 'scoped memory for tpu_custom_call.1']
    %8 = vsyncpa [#allocation3], 0
    // Predicated region
    $region2: #{tpu_custom_call.1} parent=1 // pred_check
      _
    $region3: #{tpu_custom_call.1} parent=1 // pred_check_branch
      %10 = sbr.rel (0) target = $region5
    $region4: #{tpu_custom_call.1} parent=1 // pred_region
      _
    $region5: #{tpu_custom_call.1} parent=1 // pred_fallthru
      _
    // Predicated region
    $region6: #{tpu_custom_call.1} parent=1 // pred_check
      _
    $region7: #{tpu_custom_call.1} parent=1 // pred_check_branch
      %12 = sbr.rel (0) target = $region9
    $region8: #{tpu_custom_call.1} parent=1 // pred_region
      _
    $region9: #{tpu_custom_call.1} parent=1 // pred_fallthru
      _
    // Predicated region
    $region10: #{tpu_custom_call.1} parent=1 // pred_check
      _
    $region11: #{tpu_custom_call.1} parent=1 // pred_check_branch
      %14 = sbr.rel (0) target = $region13
    $region12: #{tpu_custom_call.1} parent=1 // pred_region
      _
    $region13: #{tpu_custom_call.1} parent=1 // pred_fallthru
      _
    %v15 = vld [vmem:[%s2] sm:$0xff]
    %v16 = vld [vmem:[%s2 + $0x8] sm:$0xff]
    %v17 = vld [vmem:[%s0] sm:$0xff]
    %19 = vset.pattern.permute.xlu0 0
    %20 = vperm.xlu0 %19, %v17
    %v21 = vpop.permute.xlu0 %20
    %v23 = vmul.f32 %v15, %v21
    %v24 = vmul.f32 %v16, %v21
    %v25 = vld [vmem:[%s1] sm:$0xff]
    %27 = vset.pattern.permute.xlu0 0
    %28 = vperm.xlu0 %27, %v25
    %v29 = vpop.permute.xlu0 %28
    %v31 = vadd.f32 %v23, %v29
    %v32 = vadd.f32 %v24, %v29
    %33 = vst [vmem:[#allocation2] sm:$0xff] %v31
    %34 = vst [vmem:[#allocation2 + $0x8] sm:$0xff] %v32
    // Predicated region
    $region14: #{tpu_custom_call.1} parent=1 // pred_check
      _
    $region15: #{tpu_custom_call.1} parent=1 // pred_check_branch
      %36 = sbr.rel (0) target = $region17
    $region16: #{tpu_custom_call.1} parent=1 // pred_region
      %38 = vsyncadd [#allocation3], 0
      %s40 = sshll.u32 [#allocation2], 4
      %s41 = int_to_ptr.vmem [resolvable:$true] %s40
      %s42 = sshll.u32 %s3, 4
      %s43 = int_to_ptr.hbm [resolvable:$true] %s42
      %45 = dma.vmem_to_hbm [thread:$0]  %s41, 256, %s43, [#allocation3]
    $region17: #{tpu_custom_call.1} parent=1 // pred_fallthru
      _
    // Predicated region
    $region18: #{tpu_custom_call.1} parent=1 // pred_check
      _
    $region19: #{tpu_custom_call.1} parent=1 // pred_check_branch
      %47 = sbr.rel (0) target = $region21
    $region20: #{tpu_custom_call.1} parent=1 // pred_region
      %49 = dma.done [#allocation3], 256
    $region21: #{tpu_custom_call.1} parent=1 // pred_fallthru
      _
    %50 = vsyncpa [#allocation3], 1

</llo_original>
